<compile_context>
chip_gen: v5e
topology: v5e:2x2
jax: 0.10.0
libtpu: 0.0.40
codegen_flags: <defaults>
</compile_context>

<pallas_src>
import math

import jax
import jax.numpy as jnp
from jax.experimental import pallas as pl
from jax.experimental.pallas import tpu as pltpu

# ----------------- configuration (mirrors the torch module hyper-params) -----
B = 128                # number of rays (batch)
N_FEATURES = 4         # INGP features per level (F)
N_LEVELS = 4           # INGP levels (L)
RES_MIN, RES_MAX = 4, 16
TABLE_SIZE = 512       # power of two -> uint32 hash == torch int64 hash (low bits)
DIR_LEVELS = 4         # FourierFeatures levels
N_HIDDEN = 1           # density MLP: Linear -> ReLU -> Linear
HIDDEN = 32            # hidden_dim
HALF = HIDDEN // 2     # color MLP hidden width = 16
POS_DIM = N_FEATURES * N_LEVELS        # position_encoder.output_dim = 16
POS_FLAT = 8 * POS_DIM                 # flattened corner-major encoding width = 128
DIR_DIM = 3 * 2 * DIR_LEVELS           # direction_encoder.output_dim = 24
DARG = 3 * DIR_LEVELS                  # Fourier argument width = 12
DIR_PAD = 32                           # direction encoding zero-padded to 32 rows
PI1, PI2, PI3 = 1, 2654435761, 805459861

# packed small-weight slab row offsets (all 8-aligned -> free kernel slices)
WS_ROWS = 72
R_W2H = 0              # rows  0:32  density layer 2, z head        (32, 32)
R_W2D = HIDDEN         # row  32:33  density layer 2, density head  ( 1, 32)
R_C1Z = 40             # rows 40:56  color layer 1, z-input block   (16, 32)
R_C1D = 56             # rows 56:72  color layer 1, dir block       (16, 32) lane-padded 24->32
# packed bias slab row offsets
BIAS_ROWS = 96
B_B1 = 0               # rows  0:32  b1
B_B2H = 32             # rows 32:64  b2 (z head)
B_B2D = 64             # row  64     b2 (density head) with the "-1" folded in
B_BC1 = 72             # rows 72:88  bc1
B_BC2 = 88             # rows 88:91  bc2

# TODO(synk): n_hidden > 1 would add a loop of (ReLU, Linear HIDDENxHIDDEN)
# layers inside the kernel; only the n_hidden == 1 configuration is emitted here.
# TODO(synk): the stronger restructure is to move the hash + table gather into
# the kernel (all tables ~32 KB fit in VMEM) and feed only pos/dirs; the data
# dependent gather is kept in XLA glue here.
# TODO(synk): on v6e/v7x the weight slabs could be cast to bf16 to halve their
# DMA bytes; kept f32 because the ~1e-4 table features make the 1e-4/1e-3
# reference tolerance marginal under bf16.


# ----------------------------- Pallas kernel ---------------------------------
def nerf_kernel(pw_ref, denc_ref, w1_ref, ws_ref, wc2_ref, b_ref, out_ref):
    f32 = jnp.float32

    # Density MLP layer 1: 8-corner trilinear blend folded into the K=128 matmul.
    h = jnp.dot(w1_ref[...], pw_ref[...], preferred_element_type=f32)        # (32, TB)
    h = jnp.maximum(h + b_ref[B_B1:B_B1 + HIDDEN, :], 0.0)

    # Density MLP layer 2: z head + density head (static tile-aligned slab views).
    zh = (jnp.dot(ws_ref[R_W2H:R_W2H + HIDDEN, :], h, preferred_element_type=f32)
          + b_ref[B_B2H:B_B2H + HIDDEN, :])                                  # (32, TB)
    s = (jnp.dot(ws_ref[R_W2D:R_W2D + 1, :], h, preferred_element_type=f32)
         + b_ref[B_B2D:B_B2D + 1, :])                                        # (1, TB), "-1" folded

    # density = Softplus(threshold=8)(s); log1p(exp(s)) via series for tiny exp(s)
    t = jnp.exp(jnp.minimum(s, 8.0))
    log1p_t = jnp.where(t < 1e-4, t * (1.0 - 0.5 * t), jnp.log(1.0 + t))
    density = jnp.where(s > 8.0, s, log1p_t)                                 # (1, TB)

    # Color MLP: concat([z, cos, sin]) @ wc1 expressed as two MXU accumulations
    # (the dir encoding arrives pre-concatenated & zero-padded to K=32 from glue).
    c = (jnp.dot(ws_ref[R_C1Z:R_C1Z + HALF, :], zh, preferred_element_type=f32)
         + jnp.dot(ws_ref[R_C1D:R_C1D + HALF, :], denc_ref[...],
                   preferred_element_type=f32)
         + b_ref[B_BC1:B_BC1 + HALF, :])                                     # (16, TB)
    c = jnp.maximum(c, 0.0)
    rgb = jax.nn.sigmoid(
        jnp.dot(wc2_ref[...], c, preferred_element_type=f32)
        + b_ref[B_BC2:B_BC2 + 3, :])                                         # (3, TB)

    # Lane-dense merged output slab: row 0 = density, rows 1:4 = rgb.
    out_ref[...] = jnp.concatenate([density, rgb], axis=0)                   # (4, TB)


# ----------------------------- JAX glue: encodings ----------------------------
_CORNER_OFFSETS = jnp.array(
    [(0, 0, 0), (0, 0, 1), (0, 1, 0), (0, 1, 1),
     (1, 0, 0), (1, 0, 1), (1, 1, 0), (1, 1, 1)], dtype=jnp.float32)  # torch idx_list order


def ingp_resolutions():
    b = 1.0 if N_LEVELS == 1 else math.exp(
        (math.log(RES_MAX) - math.log(RES_MIN)) / (N_LEVELS - 1))
    return [int(math.floor(RES_MIN * b ** l)) for l in range(N_LEVELS)]


def _corner_features_and_weights(pos, tables, resolutions):
    """Corner gather + trilinear interpolation weights (XLA glue)."""
    x_norm = pos / 8.0 + 0.5
    feats_l, wts_l = [], []
    for r, table in zip(resolutions, tables):
        x_scaled = x_norm * float(r)
        x_floor = jnp.floor(x_scaled)
        corners_f = x_floor[:, None, :] + _CORNER_OFFSETS[None, :, :]        # (B, 8, 3)
        corners_i = corners_f.astype(jnp.int32)
        if table.shape[0] == (r + 1) ** 3:
            # bijective: sum(corners * [1, r+1, (r+1)^2]) with clip
            cc = jnp.clip(corners_i, 0, r)
            idx = cc[..., 0] + cc[..., 1] * (r + 1) + cc[..., 2] * (r + 1) ** 2
        else:
            # hashed; uint32 math matches the torch int64 hash because
            # TABLE_SIZE is a power of two (remainder only keeps low bits)
            # and corner coords are non-negative.
            cu = corners_i.astype(jnp.uint32)
            y = ((jnp.uint32(PI1) * cu[..., 0])
                 ^ (jnp.uint32(PI2) * cu[..., 1])
                 ^ (jnp.uint32(PI3) * cu[..., 2]))
            idx = (y % jnp.uint32(TABLE_SIZE)).astype(jnp.int32)
        feats = table[idx]                                                   # (B, 8, F)
        x_diff = jnp.abs(x_scaled[:, None, :] - corners_f)
        w = jnp.prod(1.0 - x_diff, axis=-1)                                  # (B, 8)
        feats_l.append(feats)
        wts_l.append(w)
    return feats_l, wts_l


def ingp_encode_product(pos, tables, resolutions):
    """Fused feats*wts corner-blend operand, corner-major flattened and
    transposed to (128, B) so the batch rides the lane axis in the kernel and
    the 8-corner reduction rides the first K=128 MXU matmul."""
    feats_l, wts_l = _corner_features_and_weights(pos, tables, resolutions)
    chunks = [f * w[..., None] for f, w in zip(feats_l, wts_l)]              # (B, 8, F)
    prod = jnp.concatenate(chunks, axis=-1)                                  # (B, 8, POS_DIM)
    return prod.reshape(-1, POS_FLAT).T                                      # (POS_FLAT, B)


def fourier_dir_encoding(dirs):
    """[cos(args) | sin(args)] direction encoding, zero-padded to 32 rows and
    transposed to (32, B) so the kernel's color dir-matmul is a single,
    K-padded weight block."""
    scale = jnp.tile(2.0 ** jnp.arange(DIR_LEVELS, dtype=jnp.float32), 3)
    args = jnp.repeat(dirs, DIR_LEVELS, axis=1) * scale[None, :]             # (B, DARG)
    denc = jnp.concatenate(
        [jnp.cos(args), jnp.sin(args),
         jnp.zeros((dirs.shape[0], DIR_PAD - DIR_DIM), jnp.float32)], axis=1)
    return denc.T                                                            # (DIR_PAD, B)


# ----------------------------- parameter init --------------------------------
def init_params(key):
    ks = jax.random.split(key, 8)
    resolutions = ingp_resolutions()
    tables = []
    for i, r in enumerate(resolutions):
        rows = (r + 1) ** 3 if TABLE_SIZE >= (r + 1) ** 3 else TABLE_SIZE
        tables.append(
            ((jax.random.uniform(ks[i], (rows, N_FEATURES)) * 2.0 - 1.0) * 1e-4
             ).astype(jnp.float32))

    def linear(k, fan_in, fan_out):
        kw, kb = jax.random.split(k)
        bound = 1.0 / math.sqrt(fan_in)
        w = jax.random.uniform(kw, (fan_in, fan_out), minval=-bound, maxval=bound)
        b = jax.random.uniform(kb, (1, fan_out), minval=-bound, maxval=bound)
        return w.astype(jnp.float32), b.astype(jnp.float32)

    w1, b1 = linear(ks[4], POS_DIM, HIDDEN)
    w2, b2 = linear(ks[5], HIDDEN, HIDDEN + 1)
    wc1, bc1 = linear(ks[6], HIDDEN + DIR_DIM, HALF)
    wc2, bc2 = linear(ks[7], HALF, 3)
    return resolutions, tables, (w1, b1, w2, b2, wc1, bc1, wc2, bc2)


def pack_mlp(mlp):
    """One-time repack into the kernel (feature-major) layout: w1 tiled 8x
    (corner-major) + transposed, one (72,32) slab with all 32-lane weight
    blocks at 8-aligned offsets (dir block lane-padded 24->32), wc2 transposed,
    and one (96,1) bias slab with the density '-1' folded in."""
    w1, b1, w2, b2, wc1, bc1, wc2, bc2 = mlp
    w1T = jnp.tile(w1, (8, 1)).T                                     # (HIDDEN, POS_FLAT)

    ws = jnp.zeros((WS_ROWS, HIDDEN), jnp.float32)
    ws = ws.at[R_W2H:R_W2H + HIDDEN, :].set(w2[:, :HIDDEN].T)
    ws = ws.at[R_W2D:R_W2D + 1, :].set(w2[:, HIDDEN:].T)
    ws = ws.at[R_C1Z:R_C1Z + HALF, :].set(wc1[:HIDDEN, :].T)
    ws = ws.at[R_C1D:R_C1D + HALF, :DIR_DIM].set(wc1[HIDDEN:, :].T)

    wc2T = wc2.T                                                     # (3, HALF)

    bias = jnp.zeros((BIAS_ROWS, 1), jnp.float32)
    bias = bias.at[B_B1:B_B1 + HIDDEN, 0].set(b1[0])
    bias = bias.at[B_B2H:B_B2H + HIDDEN, 0].set(b2[0, :HIDDEN])
    bias = bias.at[B_B2D, 0].set(b2[0, HIDDEN] - 1.0)                # fold the "-1"
    bias = bias.at[B_BC1:B_BC1 + HALF, 0].set(bc1[0])
    bias = bias.at[B_BC2:B_BC2 + 3, 0].set(bc2[0])
    return w1T, ws, wc2T, bias


# ----------------------------- wrapper ----------------------------------------
def _pick_batch_tile(batch):
    # Single step for small batches: per-step (~0.35 us) overhead and duplicated
    # weight DMAs dominate sub-us per-tile work (this also keeps the v7x 2-TC
    # split off at B=128).  For large ray counts, tile at <=1024 so activation
    # DMAs pipeline behind the previous tile's compute while the constant-index
    # weights stay resident.
    if batch <= 1024:
        return batch
    for tb in (1024, 512, 256, 128):
        if batch % tb == 0:
            return tb
    return batch


def nerf_forward(pos, dirs, tables, resolutions, packed_mlp):
    w1T, ws, wc2T, bias = packed_mlp
    batch = pos.shape[0]
    pwT = ingp_encode_product(pos, tables, resolutions)     # (128, B) fused feats*wts
    dencT = fourier_dir_encoding(dirs)                      # (32, B)

    tb = _pick_batch_tile(batch)
    steps = batch // tb

    act_map = lambda i: (0, i)        # activations: batch tiled along lanes
    w_map = lambda i: (0, 0)          # weights: fetched once, stay resident
    in_specs = [
        pl.BlockSpec((POS_FLAT, tb), act_map),      # fused corner-blend product
        pl.BlockSpec((DIR_PAD, tb), act_map),       # direction encoding (padded)
        pl.BlockSpec((HIDDEN, POS_FLAT), w_map),    # w1 (tiled, transposed)
        pl.BlockSpec((WS_ROWS, HIDDEN), w_map),     # packed small-weight slab
        pl.BlockSpec((3, HALF), w_map),             # wc2
        pl.BlockSpec((BIAS_ROWS, 1), w_map),        # packed bias slab
    ]
    out_specs = pl.BlockSpec((4, tb), act_map)      # lane-dense (density | rgb)
    out_shape = jax.ShapeDtypeStruct((4, batch), jnp.float32)

    flops = 2 * batch * (POS_FLAT * HIDDEN + HIDDEN * (HIDDEN + 1)
                         + HIDDEN * HALF + DIR_PAD * HALF + HALF * 3)
    bytes_accessed = 4 * (batch * (POS_FLAT + DIR_PAD + 4)
                          + HIDDEN * POS_FLAT + WS_ROWS * HIDDEN
                          + 3 * HALF + BIAS_ROWS)

    out = pl.pallas_call(
        nerf_kernel,
        grid=(steps,),
        in_specs=in_specs,
        out_specs=out_specs,
        out_shape=out_shape,
        compiler_params=pltpu.CompilerParams(dimension_semantics=("parallel",)),
        cost_estimate=pl.CostEstimate(flops=flops, transcendentals=5 * batch,
                                      bytes_accessed=bytes_accessed),
    )(pwT, dencT, w1T, ws, wc2T, bias)
    return out[0], out[1:4].T


# ----------------------------- pure-JAX reference -----------------------------
def nerf_reference(pos, dirs, tables, resolutions, mlp):
    w1, b1, w2, b2, wc1, bc1, wc2, bc2 = mlp
    feats_l, wts_l = _corner_features_and_weights(pos, tables, resolutions)
    pos_enc = jnp.concatenate(
        [jnp.sum(f * w[..., None], axis=1) for f, w in zip(feats_l, wts_l)], axis=1)
    h = jnp.maximum(pos_enc @ w1 + b1, 0.0)
    z = h @ w2 + b2
    s = z[:, HIDDEN] - 1.0
    density = jnp.where(s > 8.0, s, jnp.log1p(jnp.exp(jnp.minimum(s, 8.0))))
    scale = jnp.tile(2.0 ** jnp.arange(DIR_LEVELS, dtype=jnp.float32), 3)
    args = jnp.repeat(dirs, DIR_LEVELS, axis=1) * scale[None, :]
    dir_enc = jnp.concatenate([jnp.cos(args), jnp.sin(args)], axis=1)
    cin = jnp.concatenate([z[:, :HIDDEN], dir_enc], axis=1)
    c = jnp.maximum(cin @ wc1 + bc1, 0.0)
    rgb = jax.nn.sigmoid(c @ wc2 + bc2)
    return density, rgb


# ----------------------------- main --------------------------------------------
if __name__ == "__main__":
    key = jax.random.PRNGKey(0)
    k_pos, k_dir, k_par = jax.random.split(key, 3)

    pos = jax.random.uniform(k_pos, (B, 3), minval=-4.0, maxval=4.0,
                             dtype=jnp.float32)
    dirs = jax.random.normal(k_dir, (B, 3), dtype=jnp.float32)
    dirs = dirs / jnp.linalg.norm(dirs, axis=1, keepdims=True)

    resolutions, tables, mlp = init_params(k_par)
    packed = jax.tree_util.tree_map(jax.block_until_ready, pack_mlp(mlp))

    density, rgb = nerf_forward(pos, dirs, tables, resolutions, packed)
    jax.block_until_ready((density, rgb))

    d_ref, rgb_ref = nerf_reference(pos, dirs, tables, resolutions, mlp)
    assert density.shape == (B,) and rgb.shape == (B, 3)
    assert bool(jnp.allclose(density, d_ref, atol=1e-4, rtol=1e-3))
    assert bool(jnp.allclose(rgb, rgb_ref, atol=1e-4, rtol=1e-3))

    print("KERNEL_OK")
</pallas_src>

<mosaic_0001>
module attributes {stable_mosaic.version = 11 : i64} {
  func.func @nerf_kernel(%arg0: i32, %arg1: memref<128x128xf32, #tpu.memory_space<vmem>>, %arg2: memref<32x128xf32, #tpu.memory_space<vmem>>, %arg3: memref<32x128xf32, #tpu.memory_space<vmem>>, %arg4: memref<72x32xf32, #tpu.memory_space<vmem>>, %arg5: memref<3x16xf32, #tpu.memory_space<vmem>>, %arg6: memref<96x1xf32, #tpu.memory_space<vmem>>, %arg7: memref<4x128xf32, #tpu.memory_space<vmem>>) attributes {dimension_semantics = [#tpu.dimension_semantics<parallel>], iteration_bounds = array<i64: 1>, scalar_prefetch = 0 : i64, scratch_operands = 0 : i64, tpu.core_type = #tpu.core_type<tc>, window_params = [{transform_indices = @transform_0, window_bounds = array<i64: 128, 128>}, {transform_indices = @transform_1, window_bounds = array<i64: 32, 128>}, {pipeline_mode = #tpu.pipeline_mode<synchronous>, transform_indices = @transform_2, window_bounds = array<i64: 32, 128>}, {pipeline_mode = #tpu.pipeline_mode<synchronous>, transform_indices = @transform_3, window_bounds = array<i64: 72, 32>}, {pipeline_mode = #tpu.pipeline_mode<synchronous>, transform_indices = @transform_4, window_bounds = array<i64: 3, 16>}, {pipeline_mode = #tpu.pipeline_mode<synchronous>, transform_indices = @transform_5, window_bounds = array<i64: 96, 1>}, {transform_indices = @transform_6, window_bounds = array<i64: 4, 128>}]} {
    %c0 = arith.constant 0 : index
    %c0_0 = arith.constant 0 : index
    %0 = vector.load %arg3[%c0, %c0_0] : memref<32x128xf32, #tpu.memory_space<vmem>>, vector<32x128xf32>
    %c0_1 = arith.constant 0 : index
    %c0_2 = arith.constant 0 : index
    %1 = vector.load %arg1[%c0_1, %c0_2] : memref<128x128xf32, #tpu.memory_space<vmem>>, vector<128x128xf32>
    %cst = arith.constant dense<0.000000e+00> : vector<32x128xf32>
    %2 = tpu.matmul %0, %1, %cst {dimension_numbers = #tpu.dot_dimension_numbers<[1], [0], [0], [1], [0, 0, 1, 1], [], []>} : vector<32x128xf32>, vector<128x128xf32>, vector<32x128xf32> -> vector<32x128xf32>
    %c0_3 = arith.constant 0 : index
    %c0_4 = arith.constant 0 : index
    %3 = vector.load %arg6[%c0_3, %c0_4] : memref<96x1xf32, #tpu.memory_space<vmem>>, vector<32x1xf32>
    %4 = vector.broadcast %3 : vector<32x1xf32> to vector<32x128xf32>
    %5 = arith.addf %2, %4 : vector<32x128xf32>
    %cst_5 = arith.constant 0.000000e+00 : f32
    %6 = vector.broadcast %cst_5 : f32 to vector<32x128xf32>
    %7 = arith.maximumf %5, %6 : vector<32x128xf32>
    %c0_6 = arith.constant 0 : index
    %c0_7 = arith.constant 0 : index
    %8 = vector.load %arg4[%c0_6, %c0_7] : memref<72x32xf32, #tpu.memory_space<vmem>>, vector<32x32xf32>
    %cst_8 = arith.constant dense<0.000000e+00> : vector<32x128xf32>
    %9 = tpu.matmul %8, %7, %cst_8 {dimension_numbers = #tpu.dot_dimension_numbers<[1], [0], [0], [1], [0, 0, 1, 1], [], []>} : vector<32x32xf32>, vector<32x128xf32>, vector<32x128xf32> -> vector<32x128xf32>
    %c32 = arith.constant 32 : index
    %c0_9 = arith.constant 0 : index
    %10 = vector.load %arg6[%c32, %c0_9] : memref<96x1xf32, #tpu.memory_space<vmem>>, vector<32x1xf32>
    %11 = vector.broadcast %10 : vector<32x1xf32> to vector<32x128xf32>
    %12 = arith.addf %9, %11 : vector<32x128xf32>
    %c32_10 = arith.constant 32 : index
    %c0_11 = arith.constant 0 : index
    %13 = vector.load %arg4[%c32_10, %c0_11] : memref<72x32xf32, #tpu.memory_space<vmem>>, vector<1x32xf32>
    %cst_12 = arith.constant dense<0.000000e+00> : vector<1x128xf32>
    %14 = tpu.matmul %13, %7, %cst_12 {dimension_numbers = #tpu.dot_dimension_numbers<[1], [0], [0], [1], [0, 0, 1, 1], [], []>} : vector<1x32xf32>, vector<32x128xf32>, vector<1x128xf32> -> vector<1x128xf32>
    %c64 = arith.constant 64 : index
    %c0_13 = arith.constant 0 : index
    %15 = vector.load %arg6[%c64, %c0_13] : memref<96x1xf32, #tpu.memory_space<vmem>>, vector<1x1xf32>
    %16 = vector.broadcast %15 : vector<1x1xf32> to vector<1x128xf32>
    %17 = arith.addf %14, %16 : vector<1x128xf32>
    %cst_14 = arith.constant 8.000000e+00 : f32
    %18 = vector.broadcast %cst_14 : f32 to vector<1x128xf32>
    %19 = arith.minimumf %17, %18 : vector<1x128xf32>
    %20 = math.exp %19 : vector<1x128xf32>
    %cst_15 = arith.constant 9.99999974E-5 : f32
    %21 = vector.broadcast %cst_15 : f32 to vector<1x128xf32>
    %22 = arith.cmpf olt, %20, %21 : vector<1x128xf32>
    %cst_16 = arith.constant 5.000000e-01 : f32
    %23 = vector.broadcast %cst_16 : f32 to vector<1x128xf32>
    %24 = arith.mulf %23, %20 : vector<1x128xf32>
    %cst_17 = arith.constant 1.000000e+00 : f32
    %25 = vector.broadcast %cst_17 : f32 to vector<1x128xf32>
    %26 = arith.subf %25, %24 : vector<1x128xf32>
    %27 = arith.mulf %20, %26 : vector<1x128xf32>
    %cst_18 = arith.constant 1.000000e+00 : f32
    %28 = vector.broadcast %cst_18 : f32 to vector<1x128xf32>
    %29 = arith.addf %28, %20 : vector<1x128xf32>
    %30 = math.log %29 : vector<1x128xf32>
    %31 = arith.select %22, %27, %30 : vector<1x128xi1>, vector<1x128xf32>
    %cst_19 = arith.constant 8.000000e+00 : f32
    %32 = vector.broadcast %cst_19 : f32 to vector<1x128xf32>
    %33 = arith.cmpf ogt, %17, %32 : vector<1x128xf32>
    %34 = arith.select %33, %17, %31 : vector<1x128xi1>, vector<1x128xf32>
    %c40 = arith.constant 40 : index
    %c0_20 = arith.constant 0 : index
    %35 = vector.load %arg4[%c40, %c0_20] : memref<72x32xf32, #tpu.memory_space<vmem>>, vector<16x32xf32>
    %cst_21 = arith.constant dense<0.000000e+00> : vector<16x128xf32>
    %36 = tpu.matmul %35, %12, %cst_21 {dimension_numbers = #tpu.dot_dimension_numbers<[1], [0], [0], [1], [0, 0, 1, 1], [], []>} : vector<16x32xf32>, vector<32x128xf32>, vector<16x128xf32> -> vector<16x128xf32>
    %c56 = arith.constant 56 : index
    %c0_22 = arith.constant 0 : index
    %37 = vector.load %arg4[%c56, %c0_22] : memref<72x32xf32, #tpu.memory_space<vmem>>, vector<16x32xf32>
    %c0_23 = arith.constant 0 : index
    %c0_24 = arith.constant 0 : index
    %38 = vector.load %arg2[%c0_23, %c0_24] : memref<32x128xf32, #tpu.memory_space<vmem>>, vector<32x128xf32>
    %cst_25 = arith.constant dense<0.000000e+00> : vector<16x128xf32>
    %39 = tpu.matmul %37, %38, %cst_25 {dimension_numbers = #tpu.dot_dimension_numbers<[1], [0], [0], [1], [0, 0, 1, 1], [], []>} : vector<16x32xf32>, vector<32x128xf32>, vector<16x128xf32> -> vector<16x128xf32>
    %40 = arith.addf %36, %39 : vector<16x128xf32>
    %c72 = arith.constant 72 : index
    %c0_26 = arith.constant 0 : index
    %41 = vector.load %arg6[%c72, %c0_26] : memref<96x1xf32, #tpu.memory_space<vmem>>, vector<16x1xf32>
    %42 = vector.broadcast %41 : vector<16x1xf32> to vector<16x128xf32>
    %43 = arith.addf %40, %42 : vector<16x128xf32>
    %cst_27 = arith.constant 0.000000e+00 : f32
    %44 = vector.broadcast %cst_27 : f32 to vector<16x128xf32>
    %45 = arith.maximumf %43, %44 : vector<16x128xf32>
    %c0_28 = arith.constant 0 : index
    %c0_29 = arith.constant 0 : index
    %46 = vector.load %arg5[%c0_28, %c0_29] : memref<3x16xf32, #tpu.memory_space<vmem>>, vector<3x16xf32>
    %cst_30 = arith.constant dense<0.000000e+00> : vector<3x128xf32>
    %47 = tpu.matmul %46, %45, %cst_30 {dimension_numbers = #tpu.dot_dimension_numbers<[1], [0], [0], [1], [0, 0, 1, 1], [], []>} : vector<3x16xf32>, vector<16x128xf32>, vector<3x128xf32> -> vector<3x128xf32>
    %c88 = arith.constant 88 : index
    %c0_31 = arith.constant 0 : index
    %48 = vector.load %arg6[%c88, %c0_31] : memref<96x1xf32, #tpu.memory_space<vmem>>, vector<3x1xf32>
    %49 = vector.broadcast %48 : vector<3x1xf32> to vector<3x128xf32>
    %50 = arith.addf %47, %49 : vector<3x128xf32>
    %51 = arith.negf %50 : vector<3x128xf32>
    %52 = math.exp %51 : vector<3x128xf32>
    %cst_32 = arith.constant 1.000000e+00 : f32
    %53 = vector.broadcast %cst_32 : f32 to vector<3x128xf32>
    %54 = arith.addf %53, %52 : vector<3x128xf32>
    %55 = arith.divf %53, %54 : vector<3x128xf32>
    %56 = tpu.concatenate %34, %55 in 0 : vector<1x128xf32>, vector<3x128xf32> -> vector<4x128xf32>
    %c0_33 = arith.constant 0 : index
    %c0_34 = arith.constant 0 : index
    %57 = vector.load %arg7[%c0_33, %c0_34] : memref<4x128xf32, #tpu.memory_space<vmem>>, vector<4x128xf32>
    tpu.vector_store %arg7[%c0_33, %c0_34], %56 {strides = array<i32>} : memref<4x128xf32, #tpu.memory_space<vmem>>, vector<4x128xf32>,
    return
  }
  func.func @transform_0(%arg0: i32) -> (i32, i32) {
    %c0_i32 = arith.constant 0 : i32
    %c0_i32_0 = arith.constant 0 : i32
    return %c0_i32, %arg0 : i32, i32
  }
  func.func @transform_1(%arg0: i32) -> (i32, i32) {
    %c0_i32 = arith.constant 0 : i32
    %c0_i32_0 = arith.constant 0 : i32
    return %c0_i32, %arg0 : i32, i32
  }
  func.func @transform_2(%arg0: i32) -> (i32, i32) {
    %c0_i32 = arith.constant 0 : i32
    %c0_i32_0 = arith.constant 0 : i32
    %c0_i32_1 = arith.constant 0 : i32
    return %c0_i32, %c0_i32_0 : i32, i32
  }
  func.func @transform_3(%arg0: i32) -> (i32, i32) {
    %c0_i32 = arith.constant 0 : i32
    %c0_i32_0 = arith.constant 0 : i32
    %c0_i32_1 = arith.constant 0 : i32
    return %c0_i32, %c0_i32_0 : i32, i32
  }
  func.func @transform_4(%arg0: i32) -> (i32, i32) {
    %c0_i32 = arith.constant 0 : i32
    %c0_i32_0 = arith.constant 0 : i32
    %c0_i32_1 = arith.constant 0 : i32
    return %c0_i32, %c0_i32_0 : i32, i32
  }
  func.func @transform_5(%arg0: i32) -> (i32, i32) {
    %c0_i32 = arith.constant 0 : i32
    %c0_i32_0 = arith.constant 0 : i32
    %c0_i32_1 = arith.constant 0 : i32
    return %c0_i32, %c0_i32_0 : i32, i32
  }
  func.func @transform_6(%arg0: i32) -> (i32, i32) {
    %c0_i32 = arith.constant 0 : i32
    %c0_i32_0 = arith.constant 0 : i32
    return %c0_i32, %arg0 : i32, i32
  }
}

</mosaic_0001>

<llo_original>
// kernel: tpu_custom_call.1
$region0: #{tpu_custom_call.1}
  #allocation0 [shape = 'u32[]', space=smem, size = 0x4, offset = 0x4, fixed_abs, tag = 'smem constant byte address 0x4 - core index']
  #allocation1 [shape = 'u32[72,128]{1,0:T(1,128)}', space=vmem, size = 0x9000, scoped, tag = 'internal scratch']
  %s0 = inlined_call_operand.vmem [shape: f32[128,128], index: 0, kind: input, shape index: {}]
  %s1 = inlined_call_operand.vmem [shape: f32[32,128], index: 1, kind: input, shape index: {}]
  %s2 = inlined_call_operand.vmem [shape: f32[32,128], index: 2, kind: input, shape index: {}]
  %s3 = inlined_call_operand.vmem [shape: f32[72,32], index: 3, kind: input, shape index: {}]
  %s4 = inlined_call_operand.vmem [shape: f32[3,16], index: 4, kind: input, shape index: {}]
  %s5 = inlined_call_operand.vmem [shape: f32[96,1], index: 5, kind: input, shape index: {}]
  %s6 = inlined_call_operand.hbm [shape: f32[4,128], index: 6, kind: output, shape index: {}]
  %s7 = sld [smem:[#allocation0]]
  $region34: #{tpu_custom_call.1} parent=0
    _
  %s9 = ssub.s32 1, %s7
  %s10 = scalar_select 0, %s9, %s7
  $region1: #{tpu_custom_call.1} parent=0
    #allocation2 [shape = 'u8[2048]{0}', space=vmem, size = 0x800, scoped, tag = 'output window, operand 0, single buffered']
    #allocation3 [shape = 's32[1]{0}', space=sflag, size = 0x4, scoped, tag = 'scoped memory for tpu_custom_call.1']
    %11 = vsyncpa [#allocation3], 0
    // Predicated region
    $region2: #{tpu_custom_call.1} parent=1 // pred_check
      _
    $region3: #{tpu_custom_call.1} parent=1 // pred_check_branch
      %13 = sbr.rel (0) target = $region5
    $region4: #{tpu_custom_call.1} parent=1 // pred_region
      _
    $region5: #{tpu_custom_call.1} parent=1 // pred_fallthru
      _
    // Predicated region
    $region6: #{tpu_custom_call.1} parent=1 // pred_check
      _
    $region7: #{tpu_custom_call.1} parent=1 // pred_check_branch
      %15 = sbr.rel (0) target = $region9
    $region8: #{tpu_custom_call.1} parent=1 // pred_region
      _
    $region9: #{tpu_custom_call.1} parent=1 // pred_fallthru
      _
    // Predicated region
    $region10: #{tpu_custom_call.1} parent=1 // pred_check
      _
    $region11: #{tpu_custom_call.1} parent=1 // pred_check_branch
      %17 = sbr.rel (0) target = $region13
    $region12: #{tpu_custom_call.1} parent=1 // pred_region
      _
    $region13: #{tpu_custom_call.1} parent=1 // pred_fallthru
      _
    // Predicated region
    $region14: #{tpu_custom_call.1} parent=1 // pred_check
      _
    $region15: #{tpu_custom_call.1} parent=1 // pred_check_branch
      %19 = sbr.rel (0) target = $region17
    $region16: #{tpu_custom_call.1} parent=1 // pred_region
      _
    $region17: #{tpu_custom_call.1} parent=1 // pred_fallthru
      _
    // Predicated region
    $region18: #{tpu_custom_call.1} parent=1 // pred_check
      _
    $region19: #{tpu_custom_call.1} parent=1 // pred_check_branch
      %21 = sbr.rel (0) target = $region21
    $region20: #{tpu_custom_call.1} parent=1 // pred_region
      _
    $region21: #{tpu_custom_call.1} parent=1 // pred_fallthru
      _
    // Predicated region
    $region22: #{tpu_custom_call.1} parent=1 // pred_check
      _
    $region23: #{tpu_custom_call.1} parent=1 // pred_check_branch
      %23 = sbr.rel (0) target = $region25
    $region24: #{tpu_custom_call.1} parent=1 // pred_region
      _
    $region25: #{tpu_custom_call.1} parent=1 // pred_fallthru
      _
    %v24 = vld [vmem:[%s2] sm:$0xff]
    %v25 = vld [vmem:[%s2 + $0x8] sm:$0xff]
    %v26 = vld [vmem:[%s2 + $0x10] sm:$0xff]
    %v27 = vld [vmem:[%s2 + $0x18] sm:$0xff]
    %v28 = vld [vmem:[%s0] sm:$0xff]
    %v29 = vld [vmem:[%s0 + $0x8] sm:$0xff]
    %v30 = vld [vmem:[%s0 + $0x10] sm:$0xff]
    %v31 = vld [vmem:[%s0 + $0x18] sm:$0xff]
    %v32 = vld [vmem:[%s0 + $0x20] sm:$0xff]
    %v33 = vld [vmem:[%s0 + $0x28] sm:$0xff]
    %v34 = vld [vmem:[%s0 + $0x30] sm:$0xff]
    %v35 = vld [vmem:[%s0 + $0x38] sm:$0xff]
    %v36 = vld [vmem:[%s0 + $0x40] sm:$0xff]
    %v37 = vld [vmem:[%s0 + $0x48] sm:$0xff]
    %v38 = vld [vmem:[%s0 + $0x50] sm:$0xff]
    %v39 = vld [vmem:[%s0 + $0x58] sm:$0xff]
    %v40 = vld [vmem:[%s0 + $0x60] sm:$0xff]
    %v41 = vld [vmem:[%s0 + $0x68] sm:$0xff]
    %v42 = vld [vmem:[%s0 + $0x70] sm:$0xff]
    %v43 = vld [vmem:[%s0 + $0x78] sm:$0xff]
    %v44 = vld [vmem:[%s5] sm:$0xff]
    %v45 = vld [vmem:[%s5 + $0x8] sm:$0xff]
    %v46 = vld [vmem:[%s5 + $0x10] sm:$0xff]
    %v47 = vld [vmem:[%s5 + $0x18] sm:$0xff]
    %49 = vset.pattern.permute.xlu0 0
    %50 = vperm.xlu0 %49, %v44
    %v51 = vpop.permute.xlu0 %50
    %54 = vset.pattern.permute.xlu0 0
    %55 = vperm.xlu0 %54, %v45
    %v56 = vpop.permute.xlu0 %55
    %59 = vset.pattern.permute.xlu0 0
    %60 = vperm.xlu0 %59, %v46
    %v61 = vpop.permute.xlu0 %60
    %64 = vset.pattern.permute.xlu0 0
    %65 = vperm.xlu0 %64, %v47
    %v66 = vpop.permute.xlu0 %65
    %68 = vmatpush.msra.mxu0 %v43
    %69 = vmatpush.msra.mxu0 %v42
    %70 = vmatpush.msra.mxu0 %v41
    %71 = vmatpush.msra.mxu0 %v40
    %72 = vmatpush.msra.mxu0 %v39
    %73 = vmatpush.msra.mxu0 %v38
    %74 = vmatpush.msra.mxu0 %v37
    %75 = vmatpush.msra.mxu0 %v36
    %76 = vmatpush.msra.mxu0 %v35
    %77 = vmatpush.msra.mxu0 %v34
    %78 = vmatpush.msra.mxu0 %v33
    %79 = vmatpush.msra.mxu0 %v32
    %80 = vmatpush.msra.mxu0 %v31
    %81 = vmatpush.msra.mxu0 %v30
    %82 = vmatpush.msra.mxu0 %v29
    %83 = vmatpush.msra.mxu0 %v28
    %84 = vmatmul.f32.gmra.mxu0 %v24
    %v85 = vpop.f32.mrf.mxu0
    %v86 = vadd.f32 %v51, %v85
    %87 = vmatmul.f32.gmra.mxu0 %v25
    %v88 = vpop.f32.mrf.mxu0
    %v89 = vadd.f32 %v56, %v88
    %90 = vmatmul.f32.gmra.mxu0 %v26
    %v91 = vpop.f32.mrf.mxu0
    %v92 = vadd.f32 %v61, %v91
    %93 = vmatmul.f32.gmra.mxu0 %v27
    %v94 = vpop.f32.mrf.mxu0
    %v95 = vadd.f32 %v66, %v94
    %96 = vdwg.mxu0
    %v97 = vmax.f32 %v86, 0.0
    %v98 = vmax.f32 %v89, 0.0
    %v99 = vmax.f32 %v92, 0.0
    %v100 = vmax.f32 %v95, 0.0
    %v101 = vld [vmem:[%s3] sm:$0xff]
    %v102 = vld [vmem:[%s3 + $0x8] sm:$0xff]
    %v103 = vld [vmem:[%s3 + $0x10] sm:$0xff]
    %v104 = vld [vmem:[%s3 + $0x18] sm:$0xff]
    %v105 = vld [vmem:[%s5 + $0x20] sm:$0xff]
    %v106 = vld [vmem:[%s5 + $0x28] sm:$0xff]
    %v107 = vld [vmem:[%s5 + $0x30] sm:$0xff]
    %v108 = vld [vmem:[%s5 + $0x38] sm:$0xff]
    %110 = vset.pattern.permute.xlu0 0
    %111 = vperm.xlu0 %110, %v105
    %v112 = vpop.permute.xlu0 %111
    %115 = vset.pattern.permute.xlu0 0
    %116 = vperm.xlu0 %115, %v106
    %v117 = vpop.permute.xlu0 %116
    %120 = vset.pattern.permute.xlu0 0
    %121 = vperm.xlu0 %120, %v107
    %v122 = vpop.permute.xlu0 %121
    %125 = vset.pattern.permute.xlu0 0
    %126 = vperm.xlu0 %125, %v108
    %v127 = vpop.permute.xlu0 %126
    %vm129 = vcmask 261120
    %v131 = vsel %vm129, %v101, 0
    %v134 = vsel %vm129, %v102, 0
    %v137 = vsel %vm129, %v103, 0
    %v140 = vsel %vm129, %v104, 0
    %142 = vmatpush.msra.mxu0 0.0
    %143 = vmatpush.msra.mxu0 0.0
    %144 = vmatpush.msra.mxu0 0.0
    %145 = vmatpush.msra.mxu0 0.0
    %146 = vmatpush.msra.mxu0 0.0
    %147 = vmatpush.msra.mxu0 0.0
    %148 = vmatpush.msra.mxu0 0.0
    %149 = vmatpush.msra.mxu0 0.0
    %150 = vmatpush.msra.mxu0 0.0
    %151 = vmatpush.msra.mxu0 0.0
    %152 = vmatpush.msra.mxu0 0.0
    %153 = vmatpush.msra.mxu0 0.0
    %154 = vmatpush.msra.mxu0 %v100
    %155 = vmatpush.msra.mxu0 %v99
    %156 = vmatpush.msra.mxu0 %v98
    %157 = vmatpush.msra.mxu0 %v97
    %158 = vmatmul.f32.gmra.mxu0 %v131
    %v159 = vpop.f32.mrf.mxu0
    %v160 = vadd.f32 %v112, %v159
    %161 = vmatmul.f32.gmra.mxu0 %v134
    %v162 = vpop.f32.mrf.mxu0
    %v163 = vadd.f32 %v117, %v162
    %164 = vmatmul.f32.gmra.mxu0 %v137
    %v165 = vpop.f32.mrf.mxu0
    %v166 = vadd.f32 %v122, %v165
    %167 = vmatmul.f32.gmra.mxu0 %v140
    %v168 = vpop.f32.mrf.mxu0
    %v169 = vadd.f32 %v127, %v168
    %170 = vdwg.mxu0
    %v171 = vld [vmem:[%s3 + $0x20] sm:$0x1]
    %v172 = vld [vmem:[%s5 + $0x40] sm:$0x1]
    %174 = vset.pattern.permute.xlu0 0
    %175 = vperm.xlu0 %174, %v172
    %v176 = vpop.permute.xlu0 %175
    %v179 = vsel %vm129, %v171, 0
    %181 = vmatpush.msra.mxu0 0.0
    %182 = vmatpush.msra.mxu0 0.0
    %183 = vmatpush.msra.mxu0 0.0
    %184 = vmatpush.msra.mxu0 0.0
    %185 = vmatpush.msra.mxu0 0.0
    %186 = vmatpush.msra.mxu0 0.0
    %187 = vmatpush.msra.mxu0 0.0
    %188 = vmatpush.msra.mxu0 0.0
    %189 = vmatpush.msra.mxu0 0.0
    %190 = vmatpush.msra.mxu0 0.0
    %191 = vmatpush.msra.mxu0 0.0
    %192 = vmatpush.msra.mxu0 0.0
    %193 = vmatpush.msra.mxu0 %v100
    %194 = vmatpush.msra.mxu0 %v99
    %195 = vmatpush.msra.mxu0 %v98
    %196 = vmatpush.msra.mxu0 %v97
    %197 = vmatmul.f32.gmra.mxu0 %v179
    %v198 = vpop.f32.mrf.mxu0
    %v199 = vadd.f32 %v176, %v198
    %200 = vdwg.mxu0
    %v201 = vmin.f32 %v199, 8.0
    %v202 = vmul.f32 %v201, 1.442695
    %v203 = vpow.pop %v202
    %vm204 = vcmp.lt.f32.partialorder %v203, 0.0001
    %v205 = vmul.f32 %v203, 0.5
    %v206 = vsub.f32 1.0, %v205
    %v207 = vmul.f32 %v203, %v206
    %v208 = vadd.f32 %v203, 1.0
    %v209 = vlog2.pop %v208
    %v210 = vmul.f32 %v209, 0.6931472
    %v211 = vsel %vm204, %v207, %v210
    %vm212 = vcmp.gt.f32.partialorder %v199, 8.0
    %v213 = vsel %vm212, %v199, %v211
    %v214 = vld [vmem:[%s3 + $0x28] sm:$0xff]
    %v215 = vld [vmem:[%s3 + $0x30] sm:$0xff]
    %v216 = vld [vmem:[%s3 + $0x38] sm:$0xff]
    %v217 = vld [vmem:[%s3 + $0x40] sm:$0xff]
    %v218 = vld [vmem:[%s1] sm:$0xff]
    %v219 = vld [vmem:[%s1 + $0x8] sm:$0xff]
    %v220 = vld [vmem:[%s1 + $0x10] sm:$0xff]
    %v221 = vld [vmem:[%s1 + $0x18] sm:$0xff]
    %v223 = vsel %vm129, %v216, 0
    %v226 = vsel %vm129, %v217, 0
    %228 = vmatpush.msra.mxu0 0.0
    %229 = vmatpush.msra.mxu0 0.0
    %230 = vmatpush.msra.mxu0 0.0
    %231 = vmatpush.msra.mxu0 0.0
    %232 = vmatpush.msra.mxu0 0.0
    %233 = vmatpush.msra.mxu0 0.0
    %234 = vmatpush.msra.mxu0 0.0
    %235 = vmatpush.msra.mxu0 0.0
    %236 = vmatpush.msra.mxu0 0.0
    %237 = vmatpush.msra.mxu0 0.0
    %238 = vmatpush.msra.mxu0 0.0
    %239 = vmatpush.msra.mxu0 0.0
    %240 = vmatpush.msra.mxu0 %v221
    %241 = vmatpush.msra.mxu0 %v220
    %242 = vmatpush.msra.mxu0 %v219
    %243 = vmatpush.msra.mxu0 %v218
    %244 = vmatmul.f32.gmra.mxu0 %v223
    %v245 = vpop.f32.mrf.mxu0
    %v246 = vadd.f32 0.0, %v245
    %247 = vmatmul.f32.gmra.mxu0 %v226
    %v248 = vpop.f32.mrf.mxu0
    %v249 = vadd.f32 0.0, %v248
    %250 = vdwg.mxu0
    %v252 = vsel %vm129, %v214, 0
    %v255 = vsel %vm129, %v215, 0
    %257 = vmatpush.msra.mxu0 0.0
    %258 = vmatpush.msra.mxu0 0.0
    %259 = vmatpush.msra.mxu0 0.0
    %260 = vmatpush.msra.mxu0 0.0
    %261 = vmatpush.msra.mxu0 0.0
    %262 = vmatpush.msra.mxu0 0.0
    %263 = vmatpush.msra.mxu0 0.0
    %264 = vmatpush.msra.mxu0 0.0
    %265 = vmatpush.msra.mxu0 0.0
    %266 = vmatpush.msra.mxu0 0.0
    %267 = vmatpush.msra.mxu0 0.0
    %268 = vmatpush.msra.mxu0 0.0
    %269 = vmatpush.msra.mxu0 %v169
    %270 = vmatpush.msra.mxu0 %v166
    %271 = vmatpush.msra.mxu0 %v163
    %272 = vmatpush.msra.mxu0 %v160
    %273 = vmatmul.f32.gmra.mxu0 %v252
    %v274 = vpop.f32.mrf.mxu0
    %v275 = vadd.f32 %v246, %v274
    %276 = vmatmul.f32.gmra.mxu0 %v255
    %v277 = vpop.f32.mrf.mxu0
    %v278 = vadd.f32 %v249, %v277
    %279 = vdwg.mxu0
    %v280 = vld [vmem:[%s5 + $0x48] sm:$0xff]
    %v281 = vld [vmem:[%s5 + $0x50] sm:$0xff]
    %283 = vset.pattern.permute.xlu0 0
    %284 = vperm.xlu0 %283, %v280
    %v285 = vpop.permute.xlu0 %284
    %288 = vset.pattern.permute.xlu0 0
    %289 = vperm.xlu0 %288, %v281
    %v290 = vpop.permute.xlu0 %289
    %v292 = vadd.f32 %v275, %v285
    %v293 = vadd.f32 %v278, %v290
    %v294 = vmax.f32 %v292, 0.0
    %v295 = vmax.f32 %v293, 0.0
    %v296 = vld [vmem:[%s4] sm:$0x7]
    %v297 = vld [vmem:[%s5 + $0x58] sm:$0x7]
    %299 = vset.pattern.permute.xlu0 0
    %300 = vperm.xlu0 %299, %v297
    %v301 = vpop.permute.xlu0 %300
    %vm303 = vcmask 130048
    %v305 = vsel %vm303, %v296, 0
    %307 = vmatpush.msra.mxu0 0.0
    %308 = vmatpush.msra.mxu0 0.0
    %309 = vmatpush.msra.mxu0 0.0
    %310 = vmatpush.msra.mxu0 0.0
    %311 = vmatpush.msra.mxu0 0.0
    %312 = vmatpush.msra.mxu0 0.0
    %313 = vmatpush.msra.mxu0 0.0
    %314 = vmatpush.msra.mxu0 0.0
    %315 = vmatpush.msra.mxu0 0.0
    %316 = vmatpush.msra.mxu0 0.0
    %317 = vmatpush.msra.mxu0 0.0
    %318 = vmatpush.msra.mxu0 0.0
    %319 = vmatpush.msra.mxu0 0.0
    %320 = vmatpush.msra.mxu0 0.0
    %321 = vmatpush.msra.mxu0 %v295
    %322 = vmatpush.msra.mxu0 %v294
    %323 = vmatmul.f32.gmra.mxu0 %v305
    %v324 = vpop.f32.mrf.mxu0
    %v325 = vadd.f32 %v301, %v324
    %326 = vdwg.mxu0
    %v327 = vxor.u32 %v325, 2147483648
    %v328 = vmul.f32 %v327, 1.442695
    %v329 = vpow.pop %v328
    %v330 = vadd.f32 %v329, 1.0
    %v331 = vrcp.pop %v330
    %v332 = vmul.f32 %v330, %v331
    %v333 = vsub.f32 1.0, %v332
    %v334 = vmul.f32 %v331, %v333
    %v335 = vadd.f32 %v331, %v334
    %vm336 = vweird.f32 %v330
    %vm337 = vweird.f32 %v331
    %vm338 = vmor %vm336, %vm337
    %v339 = vsel %vm338, %v331, %v335
    %v340 = vand.u32 2147483647, %v330
    %vm341 = vcmp.eq.f32.partialorder %v340, 8.507059e+37
    %v342 = vand.u32 %v330, 2147483648
    %v343 = vor.u32 1.1754944e-38, %v342
    %v344 = vsel %vm341, %v343, %v339
    %v345 = vmul.f32 1.0, %v344
    %v347 = vrot.slane %v345, 7
    %vm349 = vcmask 1040384
    %v350 = vsel %vm349, %v213, %v347
    %351 = vst [vmem:[#allocation2] sm:$0xf] %v350
    // Predicated region
    $region26: #{tpu_custom_call.1} parent=1 // pred_check
      _
    $region27: #{tpu_custom_call.1} parent=1 // pred_check_branch
      %353 = sbr.rel (0) target = $region29
    $region28: #{tpu_custom_call.1} parent=1 // pred_region
      %355 = vsyncadd [#allocation3], 0
      %s357 = sshll.u32 [#allocation2], 4
      %s358 = int_to_ptr.vmem [resolvable:$true] %s357
      %s359 = sshll.u32 %s6, 4
      %s360 = int_to_ptr.hbm [resolvable:$true] %s359
      %362 = dma.vmem_to_hbm [thread:$0]  %s358, 64, %s360, [#allocation3]
    $region29: #{tpu_custom_call.1} parent=1 // pred_fallthru
      _
    // Predicated region
    $region30: #{tpu_custom_call.1} parent=1 // pred_check
      _
    $region31: #{tpu_custom_call.1} parent=1 // pred_check_branch
      %364 = sbr.rel (0) target = $region33
    $region32: #{tpu_custom_call.1} parent=1 // pred_region
      %366 = dma.done [#allocation3], 64
    $region33: #{tpu_custom_call.1} parent=1 // pred_fallthru
      _
    %367 = vsyncpa [#allocation3], 1

</llo_original>
